<compile_context>
chip_gen: v5e
topology: v5e:2x2
jax: 0.10.0
libtpu: 0.0.40
codegen_flags: <defaults>
</compile_context>

<pallas_src>
import functools

import jax
import jax.numpy as jnp
from jax.experimental import pallas as pl
from jax.experimental.pallas import tpu as pltpu


def _round_up(x, m):
    return ((x + m - 1) // m) * m


def _mlp_head(param_refs, x, n_hidden, action_dim, matmul_dtype):
    """Hidden MLP + fused (adv | v) head.  Returns (adv, v) in f32."""
    h = x
    for i in range(n_hidden):
        w = param_refs[2 * i][...]
        b = param_refs[2 * i + 1][...]
        h = jnp.dot(h.astype(matmul_dtype), w, preferred_element_type=jnp.float32) + b
        h = jnp.maximum(h, 0.0)
    w_head = param_refs[2 * n_hidden][...]
    b_head = param_refs[2 * n_hidden + 1][...]
    head = jnp.dot(h.astype(matmul_dtype), w_head,
                   preferred_element_type=jnp.float32) + b_head
    adv = head[:, :action_dim]                      # (tb, A)
    v = head[:, action_dim:action_dim + 1]          # (tb, 1)
    return adv, v


def _masked_adv_sum(adv, row_offset, real_batch):
    """Sum of adv over the real (unpadded) rows of this tile -> (1, 1) f32."""
    rows = jax.lax.broadcasted_iota(jnp.int32, adv.shape, 0) + row_offset
    masked = jnp.where(rows < real_batch, adv, 0.0)
    col = jnp.sum(masked, axis=1, keepdims=True)    # (tb, 1)
    return jnp.sum(col, axis=0, keepdims=True)      # (1, 1)


def _vanet_single_kernel(n_hidden, action_dim, real_batch, matmul_dtype, *refs):
    """Whole (padded) batch in one tile: MLP, global adv-mean and Q in one step."""
    x_ref = refs[0]
    q_ref = refs[-1]
    param_refs = refs[1:-1]

    adv, v = _mlp_head(param_refs, x_ref[...], n_hidden, action_dim, matmul_dtype)
    adv_sum = _masked_adv_sum(adv, 0, real_batch)                   # (1, 1)
    mean = adv_sum * (1.0 / (real_batch * action_dim))              # (1, 1)
    q_ref[...] = (v + adv - mean).astype(q_ref.dtype)


def _vanet_two_phase_kernel(n_hidden, action_dim, real_batch, tile_b, matmul_dtype,
                            *refs):
    """grid = (2, n_tiles).  Phase 0: accumulate masked adv sums into a (1,1) VMEM
    scratch.  Phase 1: recompute the cheap MLP and write Q = v + adv - mean.
    No intermediate tensors ever touch HBM."""
    x_ref = refs[0]
    q_ref = refs[-2]
    acc_ref = refs[-1]
    param_refs = refs[1:-2]

    phase = pl.program_id(0)
    tile = pl.program_id(1)

    adv, v = _mlp_head(param_refs, x_ref[...], n_hidden, action_dim, matmul_dtype)

    @pl.when(jnp.logical_and(phase == 0, tile == 0))
    def _():
        acc_ref[...] = jnp.zeros_like(acc_ref)

    @pl.when(phase == 0)
    def _():
        acc_ref[...] += _masked_adv_sum(adv, tile * tile_b, real_batch)

    @pl.when(phase == 1)
    def _():
        mean = acc_ref[...] * (1.0 / (real_batch * action_dim))     # (1, 1)
        q_ref[...] = (v + adv - mean).astype(q_ref.dtype)


def vanet_forward(x, params, *, tile_b=4096, matmul_dtype=jnp.bfloat16):
    """params: dict with 'hidden' -> list of (W_t, b) with W_t shape (in, out),
    'adv' -> (Wa_t, ba), 'v' -> (Wv_t, bv).  Weights stored pre-transposed (in, out)."""
    hidden = params["hidden"]
    wa, ba = params["adv"]
    wv, bv = params["v"]
    action_dim = wa.shape[1]
    n_hidden = len(hidden)

    # Head fusion: one (H, A+1) matmul replaces the A-wide and 1-wide heads.
    w_head = jnp.concatenate([wa, wv], axis=1)
    b_head = jnp.concatenate([ba, bv], axis=1)

    flat_params = []
    for (w, b) in hidden:
        flat_params += [w.astype(matmul_dtype), b.astype(jnp.float32)]
    flat_params += [w_head.astype(matmul_dtype), b_head.astype(jnp.float32)]

    batch, state_dim = x.shape
    tb = min(tile_b, _round_up(batch, 8))           # sublane-aligned batch tile
    padded_batch = _round_up(batch, tb)
    if padded_batch != batch:
        x = jnp.pad(x, ((0, padded_batch - batch), (0, 0)))
    n_tiles = padded_batch // tb

    out_shape = jax.ShapeDtypeStruct((padded_batch, action_dim), jnp.float32)

    # Advisory cost estimate (fused design: x read once/twice, params once, Q once).
    mlp_flops = 0
    d_in = state_dim
    for (w, _) in hidden:
        mlp_flops += 2 * padded_batch * d_in * w.shape[1]
        d_in = w.shape[1]
    mlp_flops += 2 * padded_batch * d_in * (action_dim + 1)
    param_bytes = sum(int(p.size) * p.dtype.itemsize for p in flat_params)
    x_bytes = int(x.size) * x.dtype.itemsize
    q_bytes = padded_batch * action_dim * 4

    if n_tiles == 1:
        kernel = functools.partial(_vanet_single_kernel, n_hidden, action_dim,
                                   batch, matmul_dtype)
        in_specs = [pl.BlockSpec((tb, state_dim), lambda i: (0, 0))]
        for prm in flat_params:
            in_specs.append(pl.BlockSpec(prm.shape, lambda i: (0, 0)))
        q = pl.pallas_call(
            kernel,
            out_shape=out_shape,
            grid=(1,),
            in_specs=in_specs,
            out_specs=pl.BlockSpec((tb, action_dim), lambda i: (0, 0)),
            compiler_params=pltpu.CompilerParams(
                dimension_semantics=("arbitrary",),
                vmem_limit_bytes=32 * 1024 * 1024),
            cost_estimate=pl.CostEstimate(
                flops=mlp_flops, transcendentals=0,
                bytes_accessed=x_bytes + param_bytes + q_bytes),
        )(x, *flat_params)
    else:
        kernel = functools.partial(_vanet_two_phase_kernel, n_hidden, action_dim,
                                   batch, tb, matmul_dtype)
        in_specs = [pl.BlockSpec((tb, state_dim), lambda p, i: (i, 0))]
        for prm in flat_params:
            in_specs.append(pl.BlockSpec(prm.shape, lambda p, i: (0, 0)))
        q = pl.pallas_call(
            kernel,
            out_shape=out_shape,
            grid=(2, n_tiles),
            in_specs=in_specs,
            # Phase 0 (p=0) maps every step to output block 0; the block index only
            # starts advancing in phase 1 after the block has been fully written,
            # so no garbage / duplicate Q writebacks occur during phase 0.
            out_specs=pl.BlockSpec((tb, action_dim), lambda p, i: (i * p, 0)),
            scratch_shapes=[pltpu.VMEM((1, 1), jnp.float32)],
            compiler_params=pltpu.CompilerParams(
                dimension_semantics=("arbitrary", "arbitrary"),
                vmem_limit_bytes=32 * 1024 * 1024),
            cost_estimate=pl.CostEstimate(
                flops=2 * mlp_flops, transcendentals=0,
                bytes_accessed=2 * x_bytes + param_bytes + q_bytes),
        )(x, *flat_params)

    return q[:batch]


def init_params(key, state_dim, hidden_layers_dim, action_dim):
    """Deterministic synthetic init (PyTorch-style uniform bounds), weights stored
    pre-transposed as (in, out), all f32 (wrapper casts matmul operands)."""
    params = {"hidden": []}
    in_dim = state_dim
    for h in hidden_layers_dim:
        key, k1, k2 = jax.random.split(key, 3)
        bound = 1.0 / jnp.sqrt(in_dim)
        w = jax.random.uniform(k1, (in_dim, h), jnp.float32, -bound, bound)
        b = jax.random.uniform(k2, (1, h), jnp.float32, -bound, bound)
        params["hidden"].append((w, b))
        in_dim = h

    bound = 1.0 / jnp.sqrt(in_dim)
    key, k1, k2, k3, k4 = jax.random.split(key, 5)
    wa = jax.random.uniform(k1, (in_dim, action_dim), jnp.float32, -bound, bound)
    ba = jax.random.uniform(k2, (1, action_dim), jnp.float32, -bound, bound)
    wv = jax.random.uniform(k3, (in_dim, 1), jnp.float32, -bound, bound)
    bv = jax.random.uniform(k4, (1, 1), jnp.float32, -bound, bound)
    params["adv"] = (wa, ba)
    params["v"] = (wv, bv)
    return params


def reference_forward(x, params, matmul_dtype):
    """Pure-JAX reference at matched matmul precision (bf16 MXU operands, f32 accum)."""
    h = x
    for (w, b) in params["hidden"]:
        h = jnp.maximum(
            jnp.dot(h.astype(matmul_dtype), w.astype(matmul_dtype),
                    preferred_element_type=jnp.float32) + b, 0.0)
    wa, ba = params["adv"]
    wv, bv = params["v"]
    adv = jnp.dot(h.astype(matmul_dtype), wa.astype(matmul_dtype),
                  preferred_element_type=jnp.float32) + ba
    v = jnp.dot(h.astype(matmul_dtype), wv.astype(matmul_dtype),
                preferred_element_type=jnp.float32) + bv
    return v + adv - adv.mean().reshape(-1, 1)


if __name__ == "__main__":
    # Pendulum-v0-like sizes: state_dim=3, two hidden layers of 32, 11 discretized actions.
    state_dim = 3
    hidden_layers_dim = [32, 32]
    action_dim = 11
    matmul_dtype = jnp.bfloat16

    key = jax.random.PRNGKey(0)
    key, kp = jax.random.split(key)
    params = init_params(kp, state_dim, hidden_layers_dim, action_dim)

    # Path 1: whole batch fits one tile (common DQN case) -> fully fused single step.
    key, kx = jax.random.split(key)
    x_small = jax.random.normal(kx, (8, state_dim), jnp.float32)
    q_small = vanet_forward(x_small, params, matmul_dtype=matmul_dtype)
    jax.block_until_ready(q_small)
    q_small_ref = reference_forward(x_small, params, matmul_dtype)
    assert q_small.shape == (8, action_dim)
    assert jnp.allclose(q_small, q_small_ref, atol=2e-3, rtol=2e-3), float(
        jnp.max(jnp.abs(q_small - q_small_ref)))

    # Path 2: multi-tile batch with padding -> fused two-phase grid + VMEM accumulator.
    key, kx2 = jax.random.split(key)
    x_big = jax.random.normal(kx2, (20, state_dim), jnp.float32)
    q_big = vanet_forward(x_big, params, tile_b=8, matmul_dtype=matmul_dtype)
    jax.block_until_ready(q_big)
    q_big_ref = reference_forward(x_big, params, matmul_dtype)
    assert q_big.shape == (20, action_dim)
    assert jnp.allclose(q_big, q_big_ref, atol=2e-3, rtol=2e-3), float(
        jnp.max(jnp.abs(q_big - q_big_ref)))

    print("KERNEL_OK")
</pallas_src>

<mosaic_0001>
module attributes {stable_mosaic.version = 11 : i64} {
  func.func @_vanet_single_kernel(%arg0: i32, %arg1: memref<8x3xf32, #tpu.memory_space<vmem>>, %arg2: memref<3x32xbf16, #tpu.memory_space<vmem>>, %arg3: memref<1x32xf32, #tpu.memory_space<vmem>>, %arg4: memref<32x32xbf16, #tpu.memory_space<vmem>>, %arg5: memref<1x32xf32, #tpu.memory_space<vmem>>, %arg6: memref<32x12xbf16, #tpu.memory_space<vmem>>, %arg7: memref<1x12xf32, #tpu.memory_space<vmem>>, %arg8: memref<8x11xf32, #tpu.memory_space<vmem>>) attributes {dimension_semantics = [#tpu.dimension_semantics<arbitrary>], iteration_bounds = array<i64: 1>, scalar_prefetch = 0 : i64, scratch_operands = 0 : i64, tpu.core_type = #tpu.core_type<tc>, window_params = [{pipeline_mode = #tpu.pipeline_mode<synchronous>, transform_indices = @transform_0, window_bounds = array<i64: 8, 3>}, {pipeline_mode = #tpu.pipeline_mode<synchronous>, transform_indices = @transform_1, window_bounds = array<i64: 3, 32>}, {pipeline_mode = #tpu.pipeline_mode<synchronous>, transform_indices = @transform_2, window_bounds = array<i64: 1, 32>}, {pipeline_mode = #tpu.pipeline_mode<synchronous>, transform_indices = @transform_3, window_bounds = array<i64: 32, 32>}, {pipeline_mode = #tpu.pipeline_mode<synchronous>, transform_indices = @transform_4, window_bounds = array<i64: 1, 32>}, {pipeline_mode = #tpu.pipeline_mode<synchronous>, transform_indices = @transform_5, window_bounds = array<i64: 32, 12>}, {pipeline_mode = #tpu.pipeline_mode<synchronous>, transform_indices = @transform_6, window_bounds = array<i64: 1, 12>}, {pipeline_mode = #tpu.pipeline_mode<synchronous>, transform_indices = @transform_7, window_bounds = array<i64: 8, 11>}]} {
    %c0 = arith.constant 0 : index
    %c0_0 = arith.constant 0 : index
    %0 = vector.load %arg1[%c0, %c0_0] : memref<8x3xf32, #tpu.memory_space<vmem>>, vector<8x3xf32>
    %c0_1 = arith.constant 0 : index
    %c0_2 = arith.constant 0 : index
    %1 = vector.load %arg2[%c0_1, %c0_2] : memref<3x32xbf16, #tpu.memory_space<vmem>>, vector<3x32xbf16>
    %c0_3 = arith.constant 0 : index
    %c0_4 = arith.constant 0 : index
    %2 = vector.load %arg3[%c0_3, %c0_4] : memref<1x32xf32, #tpu.memory_space<vmem>>, vector<1x32xf32>
    %3 = arith.truncf %0 : vector<8x3xf32> to vector<8x3xbf16>
    %cst = arith.constant dense<0.000000e+00> : vector<8x32xf32>
    %4 = tpu.matmul %3, %1, %cst {dimension_numbers = #tpu.dot_dimension_numbers<[1], [0], [0], [1], [0, 0, 1, 1], [], []>} : vector<8x3xbf16>, vector<3x32xbf16>, vector<8x32xf32> -> vector<8x32xf32>
    %5 = vector.broadcast %2 : vector<1x32xf32> to vector<8x32xf32>
    %6 = arith.addf %4, %5 : vector<8x32xf32>
    %cst_5 = arith.constant 0.000000e+00 : f32
    %7 = vector.broadcast %cst_5 : f32 to vector<8x32xf32>
    %8 = arith.maximumf %6, %7 : vector<8x32xf32>
    %c0_6 = arith.constant 0 : index
    %c0_7 = arith.constant 0 : index
    %9 = vector.load %arg4[%c0_6, %c0_7] : memref<32x32xbf16, #tpu.memory_space<vmem>>, vector<32x32xbf16>
    %c0_8 = arith.constant 0 : index
    %c0_9 = arith.constant 0 : index
    %10 = vector.load %arg5[%c0_8, %c0_9] : memref<1x32xf32, #tpu.memory_space<vmem>>, vector<1x32xf32>
    %11 = arith.truncf %8 : vector<8x32xf32> to vector<8x32xbf16>
    %cst_10 = arith.constant dense<0.000000e+00> : vector<8x32xf32>
    %12 = tpu.matmul %11, %9, %cst_10 {dimension_numbers = #tpu.dot_dimension_numbers<[1], [0], [0], [1], [0, 0, 1, 1], [], []>} : vector<8x32xbf16>, vector<32x32xbf16>, vector<8x32xf32> -> vector<8x32xf32>
    %13 = vector.broadcast %10 : vector<1x32xf32> to vector<8x32xf32>
    %14 = arith.addf %12, %13 : vector<8x32xf32>
    %cst_11 = arith.constant 0.000000e+00 : f32
    %15 = vector.broadcast %cst_11 : f32 to vector<8x32xf32>
    %16 = arith.maximumf %14, %15 : vector<8x32xf32>
    %c0_12 = arith.constant 0 : index
    %c0_13 = arith.constant 0 : index
    %17 = vector.load %arg6[%c0_12, %c0_13] : memref<32x12xbf16, #tpu.memory_space<vmem>>, vector<32x12xbf16>
    %c0_14 = arith.constant 0 : index
    %c0_15 = arith.constant 0 : index
    %18 = vector.load %arg7[%c0_14, %c0_15] : memref<1x12xf32, #tpu.memory_space<vmem>>, vector<1x12xf32>
    %19 = arith.truncf %16 : vector<8x32xf32> to vector<8x32xbf16>
    %cst_16 = arith.constant dense<0.000000e+00> : vector<8x12xf32>
    %20 = tpu.matmul %19, %17, %cst_16 {dimension_numbers = #tpu.dot_dimension_numbers<[1], [0], [0], [1], [0, 0, 1, 1], [], []>} : vector<8x32xbf16>, vector<32x12xbf16>, vector<8x12xf32> -> vector<8x12xf32>
    %21 = vector.broadcast %18 : vector<1x12xf32> to vector<8x12xf32>
    %22 = arith.addf %20, %21 : vector<8x12xf32>
    %23 = vector.extract_strided_slice %22 {offsets = [0, 0], sizes = [8, 11], strides = [1, 1]} : vector<8x12xf32> to vector<8x11xf32>
    %24 = vector.extract_strided_slice %22 {offsets = [0, 11], sizes = [8, 1], strides = [1, 1]} : vector<8x12xf32> to vector<8x1xf32>
    %25 = tpu.iota {dimensions = array<i32: 0>} : vector<8x11xi32>
    %c0_i32 = arith.constant 0 : i32
    %26 = vector.broadcast %c0_i32 : i32 to vector<8x11xi32>
    %27 = arith.addi %25, %26 : vector<8x11xi32>
    %c8_i32 = arith.constant 8 : i32
    %28 = vector.broadcast %c8_i32 : i32 to vector<8x11xi32>
    %29 = arith.cmpi slt, %27, %28 : vector<8x11xi32>
    %cst_17 = arith.constant 0.000000e+00 : f32
    %30 = vector.broadcast %cst_17 : f32 to vector<8x11xf32>
    %31 = arith.select %29, %23, %30 : vector<8x11xi1>, vector<8x11xf32>
    %cst_18 = arith.constant dense<0.000000e+00> : vector<8xf32>
    %32 = vector.multi_reduction <add>, %31, %cst_18 [1] : vector<8x11xf32> to vector<8xf32>
    %33 = vector.shape_cast %32 : vector<8xf32> to vector<8x1xf32>
    %cst_19 = arith.constant dense<0.000000e+00> : vector<1xf32>
    %34 = vector.multi_reduction <add>, %33, %cst_19 [0] : vector<8x1xf32> to vector<1xf32>
    %35 = vector.shape_cast %34 : vector<1xf32> to vector<1x1xf32>
    %cst_20 = arith.constant 0.0113636367 : f32
    %36 = vector.broadcast %cst_20 : f32 to vector<1x1xf32>
    %37 = arith.mulf %35, %36 : vector<1x1xf32>
    %38 = vector.broadcast %24 : vector<8x1xf32> to vector<8x11xf32>
    %39 = arith.addf %38, %23 : vector<8x11xf32>
    %40 = vector.broadcast %37 : vector<1x1xf32> to vector<8x11xf32>
    %41 = arith.subf %39, %40 : vector<8x11xf32>
    %c0_21 = arith.constant 0 : index
    %c0_22 = arith.constant 0 : index
    %42 = vector.load %arg8[%c0_21, %c0_22] : memref<8x11xf32, #tpu.memory_space<vmem>>, vector<8x11xf32>
    tpu.vector_store %arg8[%c0_21, %c0_22], %41 {strides = array<i32>} : memref<8x11xf32, #tpu.memory_space<vmem>>, vector<8x11xf32>,
    return
  }
  func.func @transform_0(%arg0: i32) -> (i32, i32) {
    %c0_i32 = arith.constant 0 : i32
    %c0_i32_0 = arith.constant 0 : i32
    %c0_i32_1 = arith.constant 0 : i32
    return %c0_i32, %c0_i32_0 : i32, i32
  }
  func.func @transform_1(%arg0: i32) -> (i32, i32) {
    %c0_i32 = arith.constant 0 : i32
    %c0_i32_0 = arith.constant 0 : i32
    %c0_i32_1 = arith.constant 0 : i32
    return %c0_i32, %c0_i32_0 : i32, i32
  }
  func.func @transform_2(%arg0: i32) -> (i32, i32) {
    %c0_i32 = arith.constant 0 : i32
    %c0_i32_0 = arith.constant 0 : i32
    %c0_i32_1 = arith.constant 0 : i32
    return %c0_i32, %c0_i32_0 : i32, i32
  }
  func.func @transform_3(%arg0: i32) -> (i32, i32) {
    %c0_i32 = arith.constant 0 : i32
    %c0_i32_0 = arith.constant 0 : i32
    %c0_i32_1 = arith.constant 0 : i32
    return %c0_i32, %c0_i32_0 : i32, i32
  }
  func.func @transform_4(%arg0: i32) -> (i32, i32) {
    %c0_i32 = arith.constant 0 : i32
    %c0_i32_0 = arith.constant 0 : i32
    %c0_i32_1 = arith.constant 0 : i32
    return %c0_i32, %c0_i32_0 : i32, i32
  }
  func.func @transform_5(%arg0: i32) -> (i32, i32) {
    %c0_i32 = arith.constant 0 : i32
    %c0_i32_0 = arith.constant 0 : i32
    %c0_i32_1 = arith.constant 0 : i32
    return %c0_i32, %c0_i32_0 : i32, i32
  }
  func.func @transform_6(%arg0: i32) -> (i32, i32) {
    %c0_i32 = arith.constant 0 : i32
    %c0_i32_0 = arith.constant 0 : i32
    %c0_i32_1 = arith.constant 0 : i32
    return %c0_i32, %c0_i32_0 : i32, i32
  }
  func.func @transform_7(%arg0: i32) -> (i32, i32) {
    %c0_i32 = arith.constant 0 : i32
    %c0_i32_0 = arith.constant 0 : i32
    %c0_i32_1 = arith.constant 0 : i32
    return %c0_i32, %c0_i32_0 : i32, i32
  }
}

</mosaic_0001>

<llo_original>
// kernel: tpu_custom_call.1
$region0: #{tpu_custom_call.1}
  #allocation0 [shape = 'u32[]', space=smem, size = 0x4, offset = 0x4, fixed_abs, tag = 'smem constant byte address 0x4 - core index']
  #allocation1 [shape = 'u32[72,128]{1,0:T(1,128)}', space=vmem, size = 0x9000, scoped, tag = 'internal scratch']
  %s0 = inlined_call_operand.vmem [shape: f32[8,3], index: 0, kind: input, shape index: {}]
  %s1 = inlined_call_operand.vmem [shape: bf16[3,32], index: 1, kind: input, shape index: {}]
  %s2 = inlined_call_operand.vmem [shape: f32[1,32], index: 2, kind: input, shape index: {}]
  %s3 = inlined_call_operand.vmem [shape: bf16[32,32], index: 3, kind: input, shape index: {}]
  %s4 = inlined_call_operand.vmem [shape: f32[1,32], index: 4, kind: input, shape index: {}]
  %s5 = inlined_call_operand.vmem [shape: bf16[32,12], index: 5, kind: input, shape index: {}]
  %s6 = inlined_call_operand.vmem [shape: f32[1,12], index: 6, kind: input, shape index: {}]
  %s7 = inlined_call_operand.hbm [shape: f32[8,11], index: 7, kind: output, shape index: {}]
  %s8 = sld [smem:[#allocation0]]
  $region38: #{tpu_custom_call.1} parent=0
    _
  %s10 = ssub.s32 1, %s8
  %s11 = scalar_select 0, %s10, %s8
  $region1: #{tpu_custom_call.1} parent=0
    #allocation2 [shape = 'u8[4096]{0}', space=vmem, size = 0x1000, scoped, tag = 'output window, operand 0, single buffered']
    #allocation3 [shape = 's32[1]{0}', space=sflag, size = 0x4, scoped, tag = 'scoped memory for tpu_custom_call.1']
    %12 = vsyncpa [#allocation3], 0
    // Predicated region
    $region2: #{tpu_custom_call.1} parent=1 // pred_check
      _
    $region3: #{tpu_custom_call.1} parent=1 // pred_check_branch
      %14 = sbr.rel (0) target = $region5
    $region4: #{tpu_custom_call.1} parent=1 // pred_region
      _
    $region5: #{tpu_custom_call.1} parent=1 // pred_fallthru
      _
    // Predicated region
    $region6: #{tpu_custom_call.1} parent=1 // pred_check
      _
    $region7: #{tpu_custom_call.1} parent=1 // pred_check_branch
      %16 = sbr.rel (0) target = $region9
    $region8: #{tpu_custom_call.1} parent=1 // pred_region
      _
    $region9: #{tpu_custom_call.1} parent=1 // pred_fallthru
      _
    // Predicated region
    $region10: #{tpu_custom_call.1} parent=1 // pred_check
      _
    $region11: #{tpu_custom_call.1} parent=1 // pred_check_branch
      %18 = sbr.rel (0) target = $region13
    $region12: #{tpu_custom_call.1} parent=1 // pred_region
      _
    $region13: #{tpu_custom_call.1} parent=1 // pred_fallthru
      _
    // Predicated region
    $region14: #{tpu_custom_call.1} parent=1 // pred_check
      _
    $region15: #{tpu_custom_call.1} parent=1 // pred_check_branch
      %20 = sbr.rel (0) target = $region17
    $region16: #{tpu_custom_call.1} parent=1 // pred_region
      _
    $region17: #{tpu_custom_call.1} parent=1 // pred_fallthru
      _
    // Predicated region
    $region18: #{tpu_custom_call.1} parent=1 // pred_check
      _
    $region19: #{tpu_custom_call.1} parent=1 // pred_check_branch
      %22 = sbr.rel (0) target = $region21
    $region20: #{tpu_custom_call.1} parent=1 // pred_region
      _
    $region21: #{tpu_custom_call.1} parent=1 // pred_fallthru
      _
    // Predicated region
    $region22: #{tpu_custom_call.1} parent=1 // pred_check
      _
    $region23: #{tpu_custom_call.1} parent=1 // pred_check_branch
      %24 = sbr.rel (0) target = $region25
    $region24: #{tpu_custom_call.1} parent=1 // pred_region
      _
    $region25: #{tpu_custom_call.1} parent=1 // pred_fallthru
      _
    // Predicated region
    $region26: #{tpu_custom_call.1} parent=1 // pred_check
      _
    $region27: #{tpu_custom_call.1} parent=1 // pred_check_branch
      %26 = sbr.rel (0) target = $region29
    $region28: #{tpu_custom_call.1} parent=1 // pred_region
      _
    $region29: #{tpu_custom_call.1} parent=1 // pred_fallthru
      _
    %v28 = vld [vmem:[%s0] sm:$0xff]
    %v29 = vld [vmem:[%s1] sm:$0x3]
    %v30 = vld [vmem:[%s2] sm:$0x1]
    %v31 = vpack.c.bf16 %v28, %v28
    %v33 = vperm.slane %v30, 0
    %vm35 = vcmask 23552
    %v37 = vsel %vm35, %v31, 0
    %vm39 = vcmask 1040384
    %vm40 = vcmask 1041408
    %v41 = vsel %vm39, 4294967295, 65535
    %v42 = vsel %vm40, %v41, 0
    %v44 = vand.u32 %v29, %v42
    %46 = vmatpush.bf16.msra.mxu0 0
    %47 = vmatpush.bf16.msra.mxu0 0
    %48 = vmatpush.bf16.msra.mxu0 0
    %49 = vmatpush.bf16.msra.mxu0 0
    %50 = vmatpush.bf16.msra.mxu0 0
    %51 = vmatpush.bf16.msra.mxu0 0
    %52 = vmatpush.bf16.msra.mxu0 0
    %53 = vmatpush.bf16.msra.mxu0 %v44
    %54 = vmatmul.bf16.gmra.mxu0 %v37
    %v55 = vpop.f32.mrf.mxu0
    %v56 = vadd.f32 %v33, %v55
    %v57 = vpop.f32.mrf.mxu0
    %58 = vdwg.mxu0
    %v59 = vmax.f32 %v56, 0.0
    %v60 = vld [vmem:[%s3] sm:$0xf]
    %v61 = vld [vmem:[%s3 + $0x4] sm:$0xf]
    %v62 = vld [vmem:[%s3 + $0x8] sm:$0xf]
    %v63 = vld [vmem:[%s3 + $0xc] sm:$0xf]
    %v64 = vld [vmem:[%s4] sm:$0x1]
    %v65 = vpack.c.bf16 %v59, %v59
    %v67 = vperm.slane %v64, 0
    %v73 = vunpack.c.l.b16 %v60
    %v74 = vunpack.c.l.b16 %v61
    %v75 = vunpack.c.l.b16 %v62
    %v76 = vunpack.c.l.b16 %v63
    %v77 = vpack.c.b16 %v74, %v73
    %v78 = vpack.c.b16 %v76, %v75
    %vm81 = vcmask 261120
    %v83 = vsel %vm81, %v65, 0
    %85 = vmatpush.bf16.msra.mxu0 0
    %86 = vmatpush.bf16.msra.mxu0 0
    %87 = vmatpush.bf16.msra.mxu0 0
    %88 = vmatpush.bf16.msra.mxu0 0
    %89 = vmatpush.bf16.msra.mxu0 0
    %90 = vmatpush.bf16.msra.mxu0 0
    %91 = vmatpush.bf16.msra.mxu0 %v78
    %92 = vmatpush.bf16.msra.mxu0 %v77
    %93 = vmatmul.bf16.gmra.mxu0 %v83
    %v94 = vpop.f32.mrf.mxu0
    %v95 = vadd.f32 %v67, %v94
    %v96 = vpop.f32.mrf.mxu0
    %97 = vdwg.mxu0
    %v98 = vmax.f32 %v95, 0.0
    %v99 = vld [vmem:[%s5] sm:$0xf]
    %v100 = vld [vmem:[%s5 + $0x4] sm:$0xf]
    %v101 = vld [vmem:[%s5 + $0x8] sm:$0xf]
    %v102 = vld [vmem:[%s5 + $0xc] sm:$0xf]
    %v103 = vld [vmem:[%s6] sm:$0x1]
    %v104 = vpack.c.bf16 %v98, %v98
    %v106 = vperm.slane %v103, 0
    %v112 = vunpack.c.l.b16 %v99
    %v113 = vunpack.c.l.b16 %v100
    %v114 = vunpack.c.l.b16 %v101
    %v115 = vunpack.c.l.b16 %v102
    %v116 = vpack.c.b16 %v113, %v112
    %v117 = vpack.c.b16 %v115, %v114
    %v121 = vsel %vm81, %v104, 0
    %123 = vmatpush.bf16.msra.mxu0 0
    %124 = vmatpush.bf16.msra.mxu0 0
    %125 = vmatpush.bf16.msra.mxu0 0
    %126 = vmatpush.bf16.msra.mxu0 0
    %127 = vmatpush.bf16.msra.mxu0 0
    %128 = vmatpush.bf16.msra.mxu0 0
    %129 = vmatpush.bf16.msra.mxu0 %v117
    %130 = vmatpush.bf16.msra.mxu0 %v116
    %131 = vmatmul.bf16.gmra.mxu0 %v121
    %v132 = vpop.f32.mrf.mxu0
    %v133 = vadd.f32 %v106, %v132
    %v134 = vpop.f32.mrf.mxu0
    %135 = vdwg.mxu0
    %v136 = vlaneseq
    %v137 = vshrl.u32 %v136, 7
    %vm138 = vcmp.lt.s32.totalorder %v137, 8
    %v139 = vsel %vm138, %v133, 0.0
    %vm140 = vcmask 89088
    %v141 = vsel %vm140, %v139, 0.0
    %142 = vadd.xlane.f32.xlu0 %v141
    %v143 = vpop.xlane.xlu0 %142
    %v144 = vrot.slane %v143, 4
    %v145 = vadd.f32 %v143, %v144
    %v146 = vrot.slane %v145, 2
    %v147 = vadd.f32 %v145, %v146
    %v148 = vrot.slane %v147, 1
    %v149 = vadd.f32 %v147, %v148
    %v150 = vmul.f32 %v149, 0.011363637
    %152 = vset.pattern.permute.xlu0 11
    %153 = vperm.xlu0 %152, %v133
    %v154 = vpop.permute.xlu0 %153
    %v156 = vadd.f32 %v154, %v133
    %v157 = vsub.f32 %v156, %v150
    %158 = vst.msk [vmem:[#allocation2] sm:$0xff] %vm140, %v157
    // Predicated region
    $region30: #{tpu_custom_call.1} parent=1 // pred_check
      _
    $region31: #{tpu_custom_call.1} parent=1 // pred_check_branch
      %160 = sbr.rel (0) target = $region33
    $region32: #{tpu_custom_call.1} parent=1 // pred_region
      %162 = vsyncadd [#allocation3], 0
      %s164 = sshll.u32 [#allocation2], 4
      %s165 = int_to_ptr.vmem [resolvable:$true] %s164
      %s166 = sshll.u32 %s7, 4
      %s167 = int_to_ptr.hbm [resolvable:$true] %s166
      %169 = dma.vmem_to_hbm [thread:$0]  %s165, 128, %s167, [#allocation3]
    $region33: #{tpu_custom_call.1} parent=1 // pred_fallthru
      _
    // Predicated region
    $region34: #{tpu_custom_call.1} parent=1 // pred_check
      _
    $region35: #{tpu_custom_call.1} parent=1 // pred_check_branch
      %171 = sbr.rel (0) target = $region37
    $region36: #{tpu_custom_call.1} parent=1 // pred_region
      %173 = dma.done [#allocation3], 128
    $region37: #{tpu_custom_call.1} parent=1 // pred_fallthru
      _
    %174 = vsyncpa [#allocation3], 1

</llo_original>
